<compile_context>
chip_gen: v5e
topology: v5e:2x2
jax: 0.10.0
libtpu: 0.0.40
codegen_flags: <defaults>
</compile_context>

<pallas_src>
import functools
import math

import jax
import jax.numpy as jnp
from jax.experimental import pallas as pl
from jax.experimental.pallas import tpu as pltpu


# ---------------------------------------------------------------------------
# Model hyper-parameters (small, consistent with the forward semantics)
# ---------------------------------------------------------------------------
B = 2            # batch
S = 8            # sequence length
D = 32           # hidden dim of token_dim
VOCAB = 32       # arithmetic-token vocabulary (arth_tokens head)
H_IGNORE = 2     # steps_ignore_logits
H_TMP = 2        # steps_tmp_moved_logits
H_DOP = 8        # steps_dense_op_logits
H_DMAP = 16      # steps_dense_map_logits
H_DEC = 2        # steps_decimal_start_logits
H_OPP = 8        # steps_op_pred
HEAD_SIZES = (VOCAB, H_IGNORE, H_TMP, H_DOP, H_DMAP, H_DEC, H_OPP)
H_TOTAL = sum(HEAD_SIZES)          # 70
H_PAD = 128                        # lane-dense padded head dimension
OUTPUT_STEPS = True                # args.output_steps


# ---------------------------------------------------------------------------
# Pallas kernel: fused head projection (+ per-position bias holding the
# positional encoding) + in-kernel first-index argmax.
# Single invocation handles all B*S rows; the single lane-dense output slab is
# (B*S, 128) f32: columns [0, H_TOTAL) are the fused head logits, column
# H_TOTAL carries the argmax token index (exact small-integer float).
# ---------------------------------------------------------------------------
def arth_head_kernel(x_ref, pb_ref, w_ref, out_ref, *, batch, vocab, h_total):
    # MXU matmul for every logit head at once: bf16 inputs, f32 accumulate.
    logits = jnp.dot(x_ref[...].astype(jnp.bfloat16), w_ref[...],
                     preferred_element_type=jnp.float32)        # (N, H_PAD)

    # Per-position bias = PE @ W + b, broadcast over batch (rows are b-major,
    # so row r uses position r % S -> a simple sublane tile of the (S,128)
    # bias block).
    logits = logits + jnp.tile(pb_ref[...], (batch, 1))          # f32 add

    # arth token index = first-index argmax over the leading `vocab` columns
    # (matches torch.argmax tie-break).  Padded columns masked to -inf.
    col = jax.lax.broadcasted_iota(jnp.int32, logits.shape, 1)   # (N, H_PAD)
    v = jnp.where(col < vocab, logits, -jnp.inf)
    mx = jnp.max(v, axis=-1, keepdims=True)                      # (N, 1)
    idx = jnp.min(jnp.where(v == mx, col, logits.shape[1]),
                  axis=-1, keepdims=True)                        # (N, 1)

    # Embed the token index into spare padded lane `h_total` so the kernel has
    # a single lane-dense output (no 1-lane masked store, no 2nd DMA stream).
    idx_f = jnp.broadcast_to(idx.astype(jnp.float32), logits.shape)
    out_ref[...] = jnp.where(col == h_total, idx_f, logits)


# ---------------------------------------------------------------------------
# Positional encoding table (tiny; depends only on start_pos / S / D).
# ---------------------------------------------------------------------------
def positional_encoding(start_pos, seq_len, dim):
    pos = (jnp.arange(seq_len, dtype=jnp.float32)
           + jnp.asarray(start_pos, jnp.float32))[:, None]            # (S, 1)
    d = jnp.arange(dim, dtype=jnp.float32)[None, :]                   # (1, D)
    inv = jnp.exp(-(2.0 * jnp.floor(d / 2.0)) / dim * math.log(10000.0))
    angle = pos * inv
    even = (jnp.arange(dim)[None, :] % 2) == 0
    return jnp.where(even, jnp.sin(angle), jnp.cos(angle))            # (S, D)


# ---------------------------------------------------------------------------
# Forward pass of ArthTransferBlock
# ---------------------------------------------------------------------------
def arth_transfer_block(token_dim, start_pos, weights, *,
                        output_steps=OUTPUT_STEPS):
    """token_dim: f32[B, S, D] continuous token representation.
    start_pos: int or int32 scalar (traced-friendly -> no retrace per value).
    weights:   (w_pad bf16[D, H_PAD], b_pad f32[1, H_PAD])."""
    w_pad, b_pad = weights
    Bv, Sv, Dv = token_dim.shape
    n_rows = Bv * Sv

    x2d = token_dim.reshape(n_rows, Dv)                           # free reshape

    # Fold positional encoding into a per-position bias: (S, H_PAD) = (8, 128)
    # -- exactly one f32 tile, computed once in the wrapper (tiny).
    pe = positional_encoding(start_pos, Sv, Dv)                   # (S, D)
    pos_bias = jnp.dot(pe, w_pad.astype(jnp.float32)) + b_pad     # (S, H_PAD)

    kernel = functools.partial(arth_head_kernel, batch=Bv,
                               vocab=VOCAB, h_total=H_TOTAL)

    vmem = pltpu.MemorySpace.VMEM
    bytes_accessed = (x2d.size * 4 + pos_bias.size * 4
                      + w_pad.size * 2 + n_rows * H_PAD * 4)
    out = pl.pallas_call(
        kernel,
        out_shape=jax.ShapeDtypeStruct((n_rows, H_PAD), jnp.float32),
        # No grid: single invocation, whole arrays resident in VMEM
        # (no degenerate double-buffering / pipeline prologue).
        in_specs=[
            pl.BlockSpec(memory_space=vmem),                      # x   (N, D)
            pl.BlockSpec(memory_space=vmem),                      # pos_bias (S, 128)
            pl.BlockSpec(memory_space=vmem),                      # W bf16 (D, 128)
        ],
        out_specs=pl.BlockSpec(memory_space=vmem),
        cost_estimate=pl.CostEstimate(flops=2 * n_rows * Dv * H_PAD,
                                      transcendentals=0,
                                      bytes_accessed=bytes_accessed),
    )(x2d, pos_bias, w_pad)

    out3 = out.reshape(Bv, Sv, H_PAD)

    # Token index lives in the spare padded lane (exact small-int float).
    arth_token_index = out3[:, :, H_TOTAL].astype(jnp.int32)      # (B, S)

    if not output_steps:
        return arth_token_index

    # Split the fused logits into the individual step heads (original offsets).
    # (Kept for module-interface parity; if the consumer can take the fused
    # slab, return `out3[..., :H_TOTAL]` + offsets instead to avoid the
    # sub-(8,128) slice fan-out.)
    offs, o = [], 0
    for h in HEAD_SIZES:
        offs.append((o, o + h))
        o += h
    (_, ig, tm_, dop, dmap, dec, opp) = [out3[:, :, a:b_] for (a, b_) in offs]
    return (arth_token_index, ig, tm_, dop, dmap, dec, opp)


# ---------------------------------------------------------------------------
# Deterministic synthetic "frozen" parameters (padded, bf16 weights)
# ---------------------------------------------------------------------------
def init_weights(key):
    k_w, k_b = jax.random.split(key)
    w = (jax.random.normal(k_w, (D, H_TOTAL), jnp.float32)
         / jnp.sqrt(jnp.float32(D)))
    b = 0.01 * jax.random.normal(k_b, (1, H_TOTAL), jnp.float32)
    w_pad = jnp.zeros((D, H_PAD), jnp.float32).at[:, :H_TOTAL].set(w)
    b_pad = jnp.zeros((1, H_PAD), jnp.float32).at[:, :H_TOTAL].set(b)
    return w_pad.astype(jnp.bfloat16), b_pad


if __name__ == "__main__":
    key = jax.random.PRNGKey(0)
    k_x, k_p = jax.random.split(key)

    token_dim = jax.random.normal(k_x, (B, S, D), jnp.float32)   # [B, S, D]
    start_pos = 3
    weights = init_weights(k_p)

    fwd = jax.jit(functools.partial(arth_transfer_block,
                                    output_steps=OUTPUT_STEPS))
    outs = fwd(token_dim, jnp.int32(start_pos), weights)
    outs = jax.block_until_ready(outs)

    # Pure-JAX reference of the same compute (same cast points as the kernel:
    # bf16(x) @ bf16(W) with f32 accumulation, plus f32 (PE @ W + b) bias).
    pe = positional_encoding(start_pos, S, D)
    pos_bias = jnp.dot(pe, weights[0].astype(jnp.float32)) + weights[1]
    x2d = token_dim.reshape(B * S, D)
    ref_logits = (jnp.dot(x2d.astype(jnp.bfloat16), weights[0],
                          preferred_element_type=jnp.float32)
                  + jnp.tile(pos_bias, (B, 1)))
    ref_heads = ref_logits[:, :H_TOTAL]

    arth_tokens = outs[0]                                        # (B, S) int32
    step_logits = jnp.concatenate(outs[1:], axis=-1).reshape(B * S, -1)

    assert jnp.allclose(step_logits, ref_heads[:, VOCAB:], atol=1e-2, rtol=1e-2)

    tok_flat = arth_tokens.reshape(-1)
    assert jnp.all((tok_flat >= 0) & (tok_flat < VOCAB))
    # Tie-robust argmax check: the selected token's reference logit must equal
    # the reference row maximum.
    chosen = jnp.take_along_axis(ref_heads[:, :VOCAB],
                                 tok_flat[:, None], axis=-1)[:, 0]
    ref_max = jnp.max(ref_heads[:, :VOCAB], axis=-1)
    assert jnp.allclose(chosen, ref_max, atol=1e-2)

    print("KERNEL_OK")
</pallas_src>

<mosaic_0001>
module attributes {stable_mosaic.version = 11 : i64} {
  func.func @arth_head_kernel(%arg0: memref<16x32xf32, #tpu.memory_space<vmem>>, %arg1: memref<8x128xf32, #tpu.memory_space<vmem>>, %arg2: memref<32x128xbf16, #tpu.memory_space<vmem>>, %arg3: memref<16x128xf32, #tpu.memory_space<vmem>>) attributes {dimension_semantics = [], scalar_prefetch = 0 : i64, scratch_operands = 0 : i64, tpu.core_type = #tpu.core_type<tc>} {
    %c0 = arith.constant 0 : index
    %c0_0 = arith.constant 0 : index
    %0 = vector.load %arg0[%c0, %c0_0] : memref<16x32xf32, #tpu.memory_space<vmem>>, vector<16x32xf32>
    %1 = arith.truncf %0 : vector<16x32xf32> to vector<16x32xbf16>
    %c0_1 = arith.constant 0 : index
    %c0_2 = arith.constant 0 : index
    %2 = vector.load %arg2[%c0_1, %c0_2] : memref<32x128xbf16, #tpu.memory_space<vmem>>, vector<32x128xbf16>
    %cst = arith.constant dense<0.000000e+00> : vector<16x128xf32>
    %3 = tpu.matmul %1, %2, %cst {dimension_numbers = #tpu.dot_dimension_numbers<[1], [0], [0], [1], [0, 0, 1, 1], [], []>} : vector<16x32xbf16>, vector<32x128xbf16>, vector<16x128xf32> -> vector<16x128xf32>
    %c0_3 = arith.constant 0 : index
    %c0_4 = arith.constant 0 : index
    %4 = vector.load %arg1[%c0_3, %c0_4] : memref<8x128xf32, #tpu.memory_space<vmem>>, vector<8x128xf32>
    %5 = tpu.concatenate %4, %4 in 0 : vector<8x128xf32>, vector<8x128xf32> -> vector<16x128xf32>
    %6 = arith.addf %3, %5 : vector<16x128xf32>
    %7 = tpu.iota {dimensions = array<i32: 1>} : vector<16x128xi32>
    %c32_i32 = arith.constant 32 : i32
    %8 = vector.broadcast %c32_i32 : i32 to vector<16x128xi32>
    %9 = arith.cmpi slt, %7, %8 : vector<16x128xi32>
    %cst_5 = arith.constant 0xFF800000 : f32
    %10 = vector.broadcast %cst_5 : f32 to vector<16x128xf32>
    %11 = arith.select %9, %6, %10 : vector<16x128xi1>, vector<16x128xf32>
    %cst_6 = arith.constant dense<0xFF800000> : vector<16xf32>
    %12 = vector.multi_reduction <maximumf>, %11, %cst_6 [1] : vector<16x128xf32> to vector<16xf32>
    %13 = vector.shape_cast %12 : vector<16xf32> to vector<16x1xf32>
    %14 = vector.broadcast %13 : vector<16x1xf32> to vector<16x128xf32>
    %15 = arith.cmpf oeq, %11, %14 : vector<16x128xf32>
    %c128_i32 = arith.constant 128 : i32
    %16 = vector.broadcast %c128_i32 : i32 to vector<16x128xi32>
    %17 = arith.select %15, %7, %16 : vector<16x128xi1>, vector<16x128xi32>
    %cst_7 = arith.constant dense<2147483647> : vector<16xi32>
    %18 = vector.multi_reduction <minsi>, %17, %cst_7 [1] : vector<16x128xi32> to vector<16xi32>
    %19 = vector.shape_cast %18 : vector<16xi32> to vector<16x1xi32>
    %20 = arith.sitofp %19 : vector<16x1xi32> to vector<16x1xf32>
    %21 = vector.shape_cast %20 : vector<16x1xf32> to vector<16x1xf32>
    %22 = vector.broadcast %21 : vector<16x1xf32> to vector<16x128xf32>
    %c70_i32 = arith.constant 70 : i32
    %23 = vector.broadcast %c70_i32 : i32 to vector<16x128xi32>
    %24 = arith.cmpi eq, %7, %23 : vector<16x128xi32>
    %25 = arith.select %24, %22, %6 : vector<16x128xi1>, vector<16x128xf32>
    %c0_8 = arith.constant 0 : index
    %c0_9 = arith.constant 0 : index
    %26 = vector.load %arg3[%c0_8, %c0_9] : memref<16x128xf32, #tpu.memory_space<vmem>>, vector<16x128xf32>
    tpu.vector_store %arg3[%c0_8, %c0_9], %25 {strides = array<i32>} : memref<16x128xf32, #tpu.memory_space<vmem>>, vector<16x128xf32>,
    return
  }
}

</mosaic_0001>

<llo_original>
// kernel: arth_transfer_block.1
$region0: #{arth_transfer_block.1}
  #allocation0 [shape = 'u32[]', space=smem, size = 0x4, offset = 0x4, fixed_abs, tag = 'smem constant byte address 0x4 - core index']
  #allocation1 [shape = 'u32[72,128]{1,0:T(1,128)}', space=vmem, size = 0x9000, scoped, tag = 'internal scratch']
  %s0 = inlined_call_operand.vmem [shape: f32[16,32], index: 0, kind: input, shape index: {}]
  %s1 = inlined_call_operand.vmem [shape: f32[8,128], index: 1, kind: input, shape index: {}]
  %s2 = inlined_call_operand.vmem [shape: bf16[32,128], index: 2, kind: input, shape index: {}]
  %s3 = inlined_call_operand.vmem [shape: f32[16,128], index: 3, kind: output, shape index: {}]
  %s4 = sld [smem:[#allocation0]]
  $region22: #{arth_transfer_block.1} parent=0
    _
  %s6 = ssub.s32 1, %s4
  %s7 = scalar_select 0, %s6, %s4
  // Predicated region
  $region2: #{arth_transfer_block.1} parent=0 // pred_check
    _
  $region3: #{arth_transfer_block.1} parent=0 // pred_check_branch
    %9 = sbr.rel (0) target = $region5
  $region4: #{arth_transfer_block.1} parent=0 // pred_region
    _
  $region5: #{arth_transfer_block.1} parent=0 // pred_fallthru
    _
  // Predicated region
  $region6: #{arth_transfer_block.1} parent=0 // pred_check
    _
  $region7: #{arth_transfer_block.1} parent=0 // pred_check_branch
    %11 = sbr.rel (0) target = $region9
  $region8: #{arth_transfer_block.1} parent=0 // pred_region
    _
  $region9: #{arth_transfer_block.1} parent=0 // pred_fallthru
    _
  // Predicated region
  $region10: #{arth_transfer_block.1} parent=0 // pred_check
    _
  $region11: #{arth_transfer_block.1} parent=0 // pred_check_branch
    %13 = sbr.rel (0) target = $region13
  $region12: #{arth_transfer_block.1} parent=0 // pred_region
    _
  $region13: #{arth_transfer_block.1} parent=0 // pred_fallthru
    _
  %v15 = vld [vmem:[%s0] sm:$0xff]
  %v16 = vld [vmem:[%s0 + $0x8] sm:$0xff]
  %v17 = vpack.c.bf16 %v16, %v15
  %v18 = vld [vmem:[%s2] sm:$0xf]
  %v19 = vld [vmem:[%s2 + $0x4] sm:$0xf]
  %v20 = vld [vmem:[%s2 + $0x8] sm:$0xf]
  %v21 = vld [vmem:[%s2 + $0xc] sm:$0xf]
  %v22 = vld [vmem:[%s1] sm:$0xff]
  %v27 = vunpack.c.l.b16 %v18
  %v28 = vunpack.c.l.b16 %v19
  %v29 = vunpack.c.l.b16 %v20
  %v30 = vunpack.c.l.b16 %v21
  %v31 = vpack.c.b16 %v28, %v27
  %v32 = vpack.c.b16 %v30, %v29
  %vm35 = vcmask 261120
  %v37 = vsel %vm35, %v17, 0
  %39 = vmatpush.bf16.msra.mxu0 0
  %40 = vmatpush.bf16.msra.mxu0 0
  %41 = vmatpush.bf16.msra.mxu0 0
  %42 = vmatpush.bf16.msra.mxu0 0
  %43 = vmatpush.bf16.msra.mxu0 0
  %44 = vmatpush.bf16.msra.mxu0 0
  %45 = vmatpush.bf16.msra.mxu0 %v32
  %46 = vmatpush.bf16.msra.mxu0 %v31
  %47 = vmatmul.bf16.gmra.mxu0 %v37
  %v48 = vpop.f32.mrf.mxu0
  %v49 = vadd.f32 %v22, %v48
  %v50 = vpop.f32.mrf.mxu0
  %v51 = vadd.f32 %v22, %v50
  %52 = vdwg.mxu0
  %v53 = vlaneseq
  %v54 = vand.u32 %v53, 127
  %vm55 = vcmp.lt.s32.totalorder %v54, 32
  %v56 = vsel %vm55, %v49, -inf
  %v57 = vsel %vm55, %v51, -inf
  %58 = vmax.xlane.f32.xlu0 %v56
  %v59 = vpop.xlane.xlu0 %58
  %60 = vmax.xlane.f32.xlu0 %v57
  %v61 = vpop.xlane.xlu0 %60
  %vm62 = vcmp.eq.f32.partialorder %v56, %v59
  %vm63 = vcmp.eq.f32.partialorder %v57, %v61
  %v64 = vsel %vm62, %v54, 128
  %v65 = vsel %vm63, %v54, 128
  %v66 = vand.u32 %v64, 65535
  %v67 = vshra.s32 %v64, 16
  %v68 = vcvt.s32.f32 %v66
  %v69 = vcvt.s32.f32 %v67
  %70 = vmin.xlane.f32.xlu0 %v69
  %v71 = vpop.xlane.xlu0 %70
  %vm72 = vcmp.eq.f32.partialorder %v69, %v71
  %v73 = vsel %vm72, %v68, inf
  %74 = vmin.xlane.f32.xlu0 %v73
  %v75 = vpop.xlane.xlu0 %74
  %v76 = vcvt.f32.s32 %v75
  %v77 = vcvt.f32.s32 %v71
  %v78 = vshll.u32 %v77, 16
  %v79 = vadd.s32 %v78, %v76
  %v80 = vand.u32 %v65, 65535
  %v81 = vshra.s32 %v65, 16
  %v82 = vcvt.s32.f32 %v80
  %v83 = vcvt.s32.f32 %v81
  %84 = vmin.xlane.f32.xlu0 %v83
  %v85 = vpop.xlane.xlu0 %84
  %vm86 = vcmp.eq.f32.partialorder %v83, %v85
  %v87 = vsel %vm86, %v82, inf
  %88 = vmin.xlane.f32.xlu0 %v87
  %v89 = vpop.xlane.xlu0 %88
  %v90 = vcvt.f32.s32 %v89
  %v91 = vcvt.f32.s32 %v85
  %v92 = vshll.u32 %v91, 16
  %v93 = vadd.s32 %v92, %v90
  %v94 = vcvt.s32.f32 %v79
  %v95 = vcvt.s32.f32 %v93
  %vm96 = vcmp.eq.s32.totalorder %v54, 70
  %v97 = vsel %vm96, %v94, %v49
  %v98 = vsel %vm96, %v95, %v51
  %99 = vst [vmem:[%s3] sm:$0xff] %v97
  %100 = vst [vmem:[%s3 + $0x8] sm:$0xff] %v98
  // Predicated region
  $region14: #{arth_transfer_block.1} parent=0 // pred_check
    _
  $region15: #{arth_transfer_block.1} parent=0 // pred_check_branch
    %102 = sbr.rel (0) target = $region17
  $region16: #{arth_transfer_block.1} parent=0 // pred_region
    _
  $region17: #{arth_transfer_block.1} parent=0 // pred_fallthru
    _
  // Predicated region
  $region18: #{arth_transfer_block.1} parent=0 // pred_check
    _
  $region19: #{arth_transfer_block.1} parent=0 // pred_check_branch
    %104 = sbr.rel (0) target = $region21
  $region20: #{arth_transfer_block.1} parent=0 // pred_region
    _
  $region21: #{arth_transfer_block.1} parent=0 // pred_fallthru
    _

</llo_original>
